<compile_context>
chip_gen: v7x
topology: tpu7x:2x2x1
jax: 0.10.0
libtpu: 0.0.40
codegen_flags: <defaults>
</compile_context>

<pallas_src>
import numpy as np
import jax
import jax.numpy as jnp
from jax.experimental import pallas as pl
from jax.experimental.pallas import tpu as pltpu


# ---------------------------------------------------------------------------
# Exact linear operators for AdaptiveAvgPool2d and bilinear interpolation
# ---------------------------------------------------------------------------
def _adaptive_avg_pool_matrix(in_size: int, out_size: int) -> np.ndarray:
    """(out_size, in_size) matrix reproducing nn.AdaptiveAvgPool1d semantics."""
    m = np.zeros((out_size, in_size), dtype=np.float32)
    for i in range(out_size):
        start = (i * in_size) // out_size
        end = -(-((i + 1) * in_size) // out_size)  # ceil division
        m[i, start:end] = 1.0 / (end - start)
    return m


def _bilinear_upsample_matrix(out_size: int, in_size: int) -> np.ndarray:
    """(out_size, in_size) 1-D linear interpolation matrix, align_corners=True."""
    m = np.zeros((out_size, in_size), dtype=np.float32)
    for i in range(out_size):
        if out_size == 1 or in_size == 1:
            src = 0.0
        else:
            src = i * (in_size - 1) / (out_size - 1)
        i0 = int(np.floor(src))
        i1 = min(i0 + 1, in_size - 1)
        w1 = src - i0
        m[i, i0] += 1.0 - w1
        m[i, i1] += w1
    return m


# ---------------------------------------------------------------------------
# VMEM-budget-aware tile selection
# ---------------------------------------------------------------------------
def _choose_b_tile(B, C_out, HW, out_bytes, cap=8, blk_budget=8 << 20):
    """Largest divisor of B (<= cap) whose resident output block fits the budget."""
    best = 1
    for t in range(1, min(B, cap) + 1):
        if B % t == 0 and t * C_out * HW * out_bytes <= blk_budget:
            best = t
    return best


def _choose_cin_tile(C_in, b_tile, HW, x_bytes, blk_budget=6 << 20):
    """C_in reduction tile: the full C_in if its x block fits the budget, else the
    largest multiple-of-128 divisor that fits (keeps BlockSpecs (8,128)-legal)."""
    if b_tile * C_in * HW * x_bytes <= blk_budget:
        return C_in
    limit = blk_budget // (b_tile * HW * x_bytes)
    best = 0
    t = 128
    while t <= min(C_in, limit):
        if C_in % t == 0:
            best = t
        t += 128
    # TODO(synk): if C_in has no multiple-of-128 divisor within the budget, we
    # fall back to an untiled reduction (vmem_limit is raised accordingly).
    return best if best else C_in


# ---------------------------------------------------------------------------
# Pallas kernel
#   grid = (n_b_tiles, n_cin_tiles)   -- C_in axis is the reduction ("arbitrary")
#   y_acc (b_tile, C_out, P^2) f32 scratch accumulates the 1x1-conv output.
# ---------------------------------------------------------------------------
def _pool_block_kernel(x_ref, poolT_ref, w_ref, bias_ref, upT_ref, o_ref, y_acc_ref):
    c_idx = pl.program_id(1)
    n_c = pl.num_programs(1)
    bt = x_ref.shape[0]                      # static batch tile (<= 8)

    @pl.when(c_idx == 0)
    def _init():
        y_acc_ref[...] = jnp.zeros_like(y_acc_ref)

    pool_t = poolT_ref[...]                  # (HW, P2)    bf16, VMEM-resident
    w = w_ref[...]                           # (C_out, Ct) bf16

    # Pool + partial 1x1 conv for this C_in tile, one sample at a time
    # (static unroll; the step is HBM-bound on the x block so the small
    # per-sample MXU matmuls are fully hidden under the DMA).
    for b in range(bt):
        x_b = x_ref[b].astype(pool_t.dtype)                                 # (Ct, HW)
        pooled = jnp.dot(x_b, pool_t, preferred_element_type=jnp.float32)   # (Ct, P2)
        y_part = jnp.dot(w, pooled.astype(w.dtype),
                         preferred_element_type=jnp.float32)                # (C_out, P2)
        y_acc_ref[b] = y_acc_ref[b] + y_part

    @pl.when(c_idx == n_c - 1)
    def _finalize():
        up_t = upT_ref[...]                  # (P2, HW) bf16, VMEM-resident
        bias = bias_ref[...]                 # (C_out, 1) f32
        for b in range(bt):
            y_b = jnp.maximum(y_acc_ref[b] + bias, 0.0)                     # bias + ReLU (f32)
            out_b = jnp.dot(y_b.astype(up_t.dtype), up_t,
                            preferred_element_type=jnp.float32)             # (C_out, HW)
            o_ref[b] = out_b.astype(o_ref.dtype)


def pool_block_forward(x_nchw, params, pool_size, *,
                       compute_dtype=jnp.bfloat16, b_tile=None, cin_tile=None):
    B, C_in, H, W = x_nchw.shape
    C_out = params["w_eff"].shape[0]
    HW = H * W
    P2 = pool_size * pool_size

    # Exact separable 1-D operators, combined into dense (HW, P2)/(P2, HW) maps.
    a_h = _adaptive_avg_pool_matrix(H, pool_size)
    a_w = _adaptive_avg_pool_matrix(W, pool_size)
    u_h = _bilinear_upsample_matrix(H, pool_size)
    u_w = _bilinear_upsample_matrix(W, pool_size)
    pool_t = jnp.asarray(np.kron(a_h, a_w).T, dtype=compute_dtype)   # (HW, P2)
    up_t = jnp.asarray(np.kron(u_h, u_w).T, dtype=compute_dtype)     # (P2, HW)

    w_eff = params["w_eff"].astype(compute_dtype)                    # (C_out, C_in)
    b_col = params["b_eff"].astype(jnp.float32).reshape(C_out, 1)    # (C_out, 1) f32

    # x stays in its native dtype; the kernel casts in-register (no extra XLA pass).
    x_flat = x_nchw.reshape(B, C_in, HW)

    x_bytes = x_flat.dtype.itemsize
    out_bytes = x_nchw.dtype.itemsize
    cdt_bytes = jnp.dtype(compute_dtype).itemsize

    if b_tile is None:
        b_tile = _choose_b_tile(B, C_out, HW, out_bytes)
    if cin_tile is None:
        cin_tile = _choose_cin_tile(C_in, b_tile, HW, x_bytes)
    assert B % b_tile == 0 and C_in % cin_tile == 0
    assert cin_tile == C_in or cin_tile % 128 == 0, "cin tile must keep BlockSpecs legal"
    grid = (B // b_tile, C_in // cin_tile)

    # VMEM estimate (double-buffered inputs/outputs) -> compiler limit with slack.
    vmem_need = (2 * b_tile * cin_tile * HW * x_bytes        # x blocks
                 + 2 * b_tile * C_out * HW * out_bytes       # output blocks
                 + 2 * C_out * cin_tile * cdt_bytes          # conv weight blocks
                 + 4 * HW * P2 * cdt_bytes                   # pool + upsample operators
                 + 2 * C_out * 4                             # bias
                 + b_tile * C_out * P2 * 4)                  # f32 accumulator scratch
    vmem_limit = int(min(64 << 20, max(32 << 20, (vmem_need * 5) // 4)))

    flops = 2 * B * HW * P2 * (C_in + C_out) + 2 * B * C_out * C_in * P2
    bytes_accessed = (B * C_in * HW * x_bytes + B * C_out * HW * out_bytes
                      + C_out * C_in * cdt_bytes + 2 * HW * P2 * cdt_bytes + C_out * 4)

    out_flat = pl.pallas_call(
        _pool_block_kernel,
        out_shape=jax.ShapeDtypeStruct((B, C_out, HW), x_nchw.dtype),
        grid_spec=pltpu.PrefetchScalarGridSpec(
            num_scalar_prefetch=0,
            grid=grid,
            in_specs=[
                pl.BlockSpec((b_tile, cin_tile, HW), lambda b, c: (b, c, 0)),
                pl.BlockSpec((HW, P2), lambda b, c: (0, 0)),        # pool op (resident)
                pl.BlockSpec((C_out, cin_tile), lambda b, c: (0, c)),
                pl.BlockSpec((C_out, 1), lambda b, c: (0, 0)),      # bias (resident)
                pl.BlockSpec((P2, HW), lambda b, c: (0, 0)),        # upsample op (resident)
            ],
            out_specs=pl.BlockSpec((b_tile, C_out, HW), lambda b, c: (b, 0, 0)),
            scratch_shapes=[pltpu.VMEM((b_tile, C_out, P2), jnp.float32)],
        ),
        compiler_params=pltpu.CompilerParams(
            dimension_semantics=("parallel", "arbitrary"),
            vmem_limit_bytes=vmem_limit,
        ),
        cost_estimate=pl.CostEstimate(
            flops=int(flops), transcendentals=0, bytes_accessed=int(bytes_accessed)),
    )(x_flat, pool_t, w_eff, b_col, up_t)

    return out_flat.reshape(B, C_out, H, W)


# ---------------------------------------------------------------------------
# Deterministic parameter init (Conv2d 1x1 [+ BatchNorm2d folded if pool_size > 1])
# ---------------------------------------------------------------------------
def init_params(key, in_channels, out_channels, pool_size, eps=1e-5):
    k1, k2, k3 = jax.random.split(key, 3)
    w = jax.random.normal(k1, (out_channels, in_channels), jnp.float32) / np.sqrt(in_channels)
    if pool_size > 1:
        # ConvNormAct: conv(bias=False) -> BatchNorm2d (eval) -> ReLU. Fold BN into conv.
        gamma = 1.0 + 0.1 * jax.random.normal(k2, (out_channels,), jnp.float32)
        beta = 0.1 * jax.random.normal(k3, (out_channels,), jnp.float32)
        running_mean = jnp.zeros((out_channels,), jnp.float32)
        running_var = jnp.ones((out_channels,), jnp.float32)
        scale = gamma / jnp.sqrt(running_var + eps)
        w_eff = w * scale[:, None]
        b_eff = beta - running_mean * scale
    else:
        # pool_size == 1: norm layer is Identity; plain conv bias.
        w_eff = w
        b_eff = 0.1 * jax.random.normal(k2, (out_channels,), jnp.float32)
    return {"w_eff": w_eff, "b_eff": b_eff}


# ---------------------------------------------------------------------------
# Pure-JAX reference (f32) for a correctness check
# ---------------------------------------------------------------------------
def pool_block_reference(x_nchw, params, pool_size):
    a_h = jnp.asarray(_adaptive_avg_pool_matrix(x_nchw.shape[2], pool_size))
    a_w = jnp.asarray(_adaptive_avg_pool_matrix(x_nchw.shape[3], pool_size))
    u_h = jnp.asarray(_bilinear_upsample_matrix(x_nchw.shape[2], pool_size))
    u_w = jnp.asarray(_bilinear_upsample_matrix(x_nchw.shape[3], pool_size))
    pooled = jnp.einsum("ph,bchw,qw->bcpq", a_h, x_nchw, a_w)
    y = jnp.einsum("oc,bcpq->bopq", params["w_eff"], pooled) + params["b_eff"][None, :, None, None]
    y = jnp.maximum(y, 0.0)
    return jnp.einsum("hp,bopq,wq->bohw", u_h, y, u_w)


if __name__ == "__main__":
    key = jax.random.PRNGKey(0)
    # (B, C_in, C_out, H, W, pool_size, forced cin_tile)
    configs = [
        (2, 4, 8, 16, 16, 4, None),    # single C_in step (no reduction over grid)
        (2, 256, 8, 8, 8, 2, 128),     # two C_in steps: accumulate + finalize path
        (2, 4, 8, 16, 16, 1, None),    # pool_size=1: Identity norm, plain conv bias
    ]
    for (B, C_in, C_out, H, W, pool_size, ct) in configs:
        key, k_x, k_p = jax.random.split(key, 3)
        x = jax.random.normal(k_x, (B, C_in, H, W), jnp.float32)
        params = init_params(k_p, C_in, C_out, pool_size)

        out = pool_block_forward(x, params, pool_size, cin_tile=ct)
        out = jax.block_until_ready(out)

        ref = pool_block_reference(x, params, pool_size)
        # bf16 MXU operands with f32 accumulation -> tolerance loosened accordingly.
        np.testing.assert_allclose(np.asarray(out), np.asarray(ref), rtol=3e-2, atol=3e-2)
        assert out.shape == (B, C_out, H, W)

    print("KERNEL_OK")
</pallas_src>

<mosaic_0001>
module attributes {stable_mosaic.version = 11 : i64} {
  func.func @_pool_block_kernel(%arg0: i32, %arg1: i32, %arg2: memref<2x4x256xf32, #tpu.memory_space<vmem>>, %arg3: memref<256x16xbf16, #tpu.memory_space<vmem>>, %arg4: memref<8x4xbf16, #tpu.memory_space<vmem>>, %arg5: memref<8x1xf32, #tpu.memory_space<vmem>>, %arg6: memref<16x256xbf16, #tpu.memory_space<vmem>>, %arg7: memref<2x8x256xf32, #tpu.memory_space<vmem>>, %arg8: memref<2x8x16xf32, #tpu.memory_space<vmem>>) attributes {dimension_semantics = [#tpu.dimension_semantics<parallel>, #tpu.dimension_semantics<arbitrary>], iteration_bounds = array<i64: 1, 1>, scalar_prefetch = 0 : i64, scratch_operands = 1 : i64, tpu.core_type = #tpu.core_type<tc>, window_params = [{transform_indices = @transform_0, window_bounds = array<i64: 2, 4, 256>}, {pipeline_mode = #tpu.pipeline_mode<synchronous>, transform_indices = @transform_1, window_bounds = array<i64: 256, 16>}, {transform_indices = @transform_2, window_bounds = array<i64: 8, 4>}, {pipeline_mode = #tpu.pipeline_mode<synchronous>, transform_indices = @transform_3, window_bounds = array<i64: 8, 1>}, {pipeline_mode = #tpu.pipeline_mode<synchronous>, transform_indices = @transform_4, window_bounds = array<i64: 16, 256>}, {transform_indices = @transform_5, window_bounds = array<i64: 2, 8, 256>}]} {
    %c0_i32 = arith.constant 0 : i32
    %0 = arith.cmpi eq, %arg1, %c0_i32 : i32
    %1 = arith.extui %0 : i1 to i32
    %c0_i32_0 = arith.constant 0 : i32
    %2 = arith.cmpi ne, %1, %c0_i32_0 : i32
    scf.if %2 {
      %cst_26 = arith.constant 0.000000e+00 : f32
      %32 = vector.broadcast %cst_26 : f32 to vector<2x8x16xf32>
      %c0_27 = arith.constant 0 : index
      %c0_28 = arith.constant 0 : index
      %c0_29 = arith.constant 0 : index
      %33 = vector.load %arg8[%c0_27, %c0_28, %c0_29] : memref<2x8x16xf32, #tpu.memory_space<vmem>>, vector<2x8x16xf32>
      tpu.vector_store %arg8[%c0_27, %c0_28, %c0_29], %32 {strides = array<i32>} : memref<2x8x16xf32, #tpu.memory_space<vmem>>, vector<2x8x16xf32>,
    } else {
    }
    %c0 = arith.constant 0 : index
    %c0_1 = arith.constant 0 : index
    %3 = vector.load %arg3[%c0, %c0_1] : memref<256x16xbf16, #tpu.memory_space<vmem>>, vector<256x16xbf16>
    %c0_2 = arith.constant 0 : index
    %c0_3 = arith.constant 0 : index
    %4 = vector.load %arg4[%c0_2, %c0_3] : memref<8x4xbf16, #tpu.memory_space<vmem>>, vector<8x4xbf16>
    %c0_4 = arith.constant 0 : index
    %c0_5 = arith.constant 0 : index
    %c0_6 = arith.constant 0 : index
    %5 = vector.load %arg2[%c0_4, %c0_5, %c0_6] : memref<2x4x256xf32, #tpu.memory_space<vmem>>, vector<1x4x256xf32>
    %6 = vector.shape_cast %5 : vector<1x4x256xf32> to vector<4x256xf32>
    %7 = arith.truncf %6 : vector<4x256xf32> to vector<4x256xbf16>
    %cst = arith.constant dense<0.000000e+00> : vector<4x16xf32>
    %8 = tpu.matmul %7, %3, %cst {dimension_numbers = #tpu.dot_dimension_numbers<[1], [0], [0], [1], [0, 0, 1, 1], [], []>} : vector<4x256xbf16>, vector<256x16xbf16>, vector<4x16xf32> -> vector<4x16xf32>
    %9 = arith.truncf %8 : vector<4x16xf32> to vector<4x16xbf16>
    %cst_7 = arith.constant dense<0.000000e+00> : vector<8x16xf32>
    %10 = tpu.matmul %4, %9, %cst_7 {dimension_numbers = #tpu.dot_dimension_numbers<[1], [0], [0], [1], [0, 0, 1, 1], [], []>} : vector<8x4xbf16>, vector<4x16xbf16>, vector<8x16xf32> -> vector<8x16xf32>
    %c0_8 = arith.constant 0 : index
    %c0_9 = arith.constant 0 : index
    %c0_10 = arith.constant 0 : index
    %11 = vector.load %arg8[%c0_8, %c0_9, %c0_10] : memref<2x8x16xf32, #tpu.memory_space<vmem>>, vector<1x8x16xf32>
    %12 = vector.shape_cast %11 : vector<1x8x16xf32> to vector<8x16xf32>
    %13 = arith.addf %12, %10 : vector<8x16xf32>
    %c0_11 = arith.constant 0 : index
    %c0_12 = arith.constant 0 : index
    %c0_13 = arith.constant 0 : index
    %14 = vector.load %arg8[%c0_11, %c0_12, %c0_13] : memref<2x8x16xf32, #tpu.memory_space<vmem>>, vector<1x8x16xf32>
    %15 = vector.shape_cast %14 : vector<1x8x16xf32> to vector<8x16xf32>
    %16 = vector.shape_cast %13 : vector<8x16xf32> to vector<1x8x16xf32>
    tpu.vector_store %arg8[%c0_11, %c0_12, %c0_13], %16 {strides = array<i32>} : memref<2x8x16xf32, #tpu.memory_space<vmem>>, vector<1x8x16xf32>,
    %c1 = arith.constant 1 : index
    %c0_14 = arith.constant 0 : index
    %c0_15 = arith.constant 0 : index
    %17 = vector.load %arg2[%c1, %c0_14, %c0_15] : memref<2x4x256xf32, #tpu.memory_space<vmem>>, vector<1x4x256xf32>
    %18 = vector.shape_cast %17 : vector<1x4x256xf32> to vector<4x256xf32>
    %19 = arith.truncf %18 : vector<4x256xf32> to vector<4x256xbf16>
    %cst_16 = arith.constant dense<0.000000e+00> : vector<4x16xf32>
    %20 = tpu.matmul %19, %3, %cst_16 {dimension_numbers = #tpu.dot_dimension_numbers<[1], [0], [0], [1], [0, 0, 1, 1], [], []>} : vector<4x256xbf16>, vector<256x16xbf16>, vector<4x16xf32> -> vector<4x16xf32>
    %21 = arith.truncf %20 : vector<4x16xf32> to vector<4x16xbf16>
    %cst_17 = arith.constant dense<0.000000e+00> : vector<8x16xf32>
    %22 = tpu.matmul %4, %21, %cst_17 {dimension_numbers = #tpu.dot_dimension_numbers<[1], [0], [0], [1], [0, 0, 1, 1], [], []>} : vector<8x4xbf16>, vector<4x16xbf16>, vector<8x16xf32> -> vector<8x16xf32>
    %c1_18 = arith.constant 1 : index
    %c0_19 = arith.constant 0 : index
    %c0_20 = arith.constant 0 : index
    %23 = vector.load %arg8[%c1_18, %c0_19, %c0_20] : memref<2x8x16xf32, #tpu.memory_space<vmem>>, vector<1x8x16xf32>
    %24 = vector.shape_cast %23 : vector<1x8x16xf32> to vector<8x16xf32>
    %25 = arith.addf %24, %22 : vector<8x16xf32>
    %c1_21 = arith.constant 1 : index
    %c0_22 = arith.constant 0 : index
    %c0_23 = arith.constant 0 : index
    %26 = vector.load %arg8[%c1_21, %c0_22, %c0_23] : memref<2x8x16xf32, #tpu.memory_space<vmem>>, vector<1x8x16xf32>
    %27 = vector.shape_cast %26 : vector<1x8x16xf32> to vector<8x16xf32>
    %28 = vector.shape_cast %25 : vector<8x16xf32> to vector<1x8x16xf32>
    tpu.vector_store %arg8[%c1_21, %c0_22, %c0_23], %28 {strides = array<i32>} : memref<2x8x16xf32, #tpu.memory_space<vmem>>, vector<1x8x16xf32>,
    %c0_i32_24 = arith.constant 0 : i32
    %29 = arith.cmpi eq, %arg1, %c0_i32_24 : i32
    %30 = arith.extui %29 : i1 to i32
    %c0_i32_25 = arith.constant 0 : i32
    %31 = arith.cmpi ne, %30, %c0_i32_25 : i32
    scf.if %31 {
      %c0_26 = arith.constant 0 : index
      %c0_27 = arith.constant 0 : index
      %32 = vector.load %arg6[%c0_26, %c0_27] : memref<16x256xbf16, #tpu.memory_space<vmem>>, vector<16x256xbf16>
      %c0_28 = arith.constant 0 : index
      %c0_29 = arith.constant 0 : index
      %33 = vector.load %arg5[%c0_28, %c0_29] : memref<8x1xf32, #tpu.memory_space<vmem>>, vector<8x1xf32>
      %c0_30 = arith.constant 0 : index
      %c0_31 = arith.constant 0 : index
      %c0_32 = arith.constant 0 : index
      %34 = vector.load %arg8[%c0_30, %c0_31, %c0_32] : memref<2x8x16xf32, #tpu.memory_space<vmem>>, vector<1x8x16xf32>
      %35 = vector.shape_cast %34 : vector<1x8x16xf32> to vector<8x16xf32>
      %36 = vector.broadcast %33 : vector<8x1xf32> to vector<8x16xf32>
      %37 = arith.addf %35, %36 : vector<8x16xf32>
      %cst_33 = arith.constant 0.000000e+00 : f32
      %38 = vector.broadcast %cst_33 : f32 to vector<8x16xf32>
      %39 = arith.maximumf %37, %38 : vector<8x16xf32>
      %40 = arith.truncf %39 : vector<8x16xf32> to vector<8x16xbf16>
      %cst_34 = arith.constant dense<0.000000e+00> : vector<8x256xf32>
      %41 = tpu.matmul %40, %32, %cst_34 {dimension_numbers = #tpu.dot_dimension_numbers<[1], [0], [0], [1], [0, 0, 1, 1], [], []>} : vector<8x16xbf16>, vector<16x256xbf16>, vector<8x256xf32> -> vector<8x256xf32>
      %c0_35 = arith.constant 0 : index
      %c0_36 = arith.constant 0 : index
      %c0_37 = arith.constant 0 : index
      %42 = vector.load %arg7[%c0_35, %c0_36, %c0_37] : memref<2x8x256xf32, #tpu.memory_space<vmem>>, vector<1x8x256xf32>
      %43 = vector.shape_cast %42 : vector<1x8x256xf32> to vector<8x256xf32>
      %44 = vector.shape_cast %41 : vector<8x256xf32> to vector<1x8x256xf32>
      tpu.vector_store %arg7[%c0_35, %c0_36, %c0_37], %44 {strides = array<i32>} : memref<2x8x256xf32, #tpu.memory_space<vmem>>, vector<1x8x256xf32>,
      %c1_38 = arith.constant 1 : index
      %c0_39 = arith.constant 0 : index
      %c0_40 = arith.constant 0 : index
      %45 = vector.load %arg8[%c1_38, %c0_39, %c0_40] : memref<2x8x16xf32, #tpu.memory_space<vmem>>, vector<1x8x16xf32>
      %46 = vector.shape_cast %45 : vector<1x8x16xf32> to vector<8x16xf32>
      %47 = vector.broadcast %33 : vector<8x1xf32> to vector<8x16xf32>
      %48 = arith.addf %46, %47 : vector<8x16xf32>
      %cst_41 = arith.constant 0.000000e+00 : f32
      %49 = vector.broadcast %cst_41 : f32 to vector<8x16xf32>
      %50 = arith.maximumf %48, %49 : vector<8x16xf32>
      %51 = arith.truncf %50 : vector<8x16xf32> to vector<8x16xbf16>
      %cst_42 = arith.constant dense<0.000000e+00> : vector<8x256xf32>
      %52 = tpu.matmul %51, %32, %cst_42 {dimension_numbers = #tpu.dot_dimension_numbers<[1], [0], [0], [1], [0, 0, 1, 1], [], []>} : vector<8x16xbf16>, vector<16x256xbf16>, vector<8x256xf32> -> vector<8x256xf32>
      %c1_43 = arith.constant 1 : index
      %c0_44 = arith.constant 0 : index
      %c0_45 = arith.constant 0 : index
      %53 = vector.load %arg7[%c1_43, %c0_44, %c0_45] : memref<2x8x256xf32, #tpu.memory_space<vmem>>, vector<1x8x256xf32>
      %54 = vector.shape_cast %53 : vector<1x8x256xf32> to vector<8x256xf32>
      %55 = vector.shape_cast %52 : vector<8x256xf32> to vector<1x8x256xf32>
      tpu.vector_store %arg7[%c1_43, %c0_44, %c0_45], %55 {strides = array<i32>} : memref<2x8x256xf32, #tpu.memory_space<vmem>>, vector<1x8x256xf32>,
    } else {
    }
    return
  }
  func.func @transform_0(%arg0: i32, %arg1: i32) -> (i32, i32, i32) {
    %c0_i32 = arith.constant 0 : i32
    %c0_i32_0 = arith.constant 0 : i32
    return %arg0, %arg1, %c0_i32 : i32, i32, i32
  }
  func.func @transform_1(%arg0: i32, %arg1: i32) -> (i32, i32) {
    %c0_i32 = arith.constant 0 : i32
    %c0_i32_0 = arith.constant 0 : i32
    %c0_i32_1 = arith.constant 0 : i32
    return %c0_i32, %c0_i32_0 : i32, i32
  }
  func.func @transform_2(%arg0: i32, %arg1: i32) -> (i32, i32) {
    %c0_i32 = arith.constant 0 : i32
    %c0_i32_0 = arith.constant 0 : i32
    return %c0_i32, %arg1 : i32, i32
  }
  func.func @transform_3(%arg0: i32, %arg1: i32) -> (i32, i32) {
    %c0_i32 = arith.constant 0 : i32
    %c0_i32_0 = arith.constant 0 : i32
    %c0_i32_1 = arith.constant 0 : i32
    return %c0_i32, %c0_i32_0 : i32, i32
  }
  func.func @transform_4(%arg0: i32, %arg1: i32) -> (i32, i32) {
    %c0_i32 = arith.constant 0 : i32
    %c0_i32_0 = arith.constant 0 : i32
    %c0_i32_1 = arith.constant 0 : i32
    return %c0_i32, %c0_i32_0 : i32, i32
  }
  func.func @transform_5(%arg0: i32, %arg1: i32) -> (i32, i32, i32) {
    %c0_i32 = arith.constant 0 : i32
    %c0_i32_0 = arith.constant 0 : i32
    %c0_i32_1 = arith.constant 0 : i32
    return %arg0, %c0_i32, %c0_i32_0 : i32, i32, i32
  }
}

</mosaic_0001>

<llo_original>
// kernel: tpu_custom_call.1
$region0: #{tpu_custom_call.1}
  #allocation0 [shape = 'u32[]', space=smem, size = 0x4, offset = 0x4, fixed_abs, tag = 'smem constant byte address 0x4 - core index']
  #allocation1 [shape = 'u32[144,128]{1,0:T(1,128)}', space=vmem, size = 0x12000, scoped, tag = 'internal scratch']
  #allocation2 [shape = 'f32[2,8,16]{2,1,0:T(8,128)}', space=vmem, size = 0x2000, scoped, tag = 'scratch operand']
  %s0 = inlined_call_operand.vmem [shape: f32[2,4,256], index: 0, kind: input, shape index: {}]
  %s1 = inlined_call_operand.vmem [shape: bf16[256,16], index: 1, kind: input, shape index: {}]
  %s2 = inlined_call_operand.vmem [shape: bf16[8,4], index: 2, kind: input, shape index: {}]
  %s3 = inlined_call_operand.vmem [shape: f32[8,1], index: 3, kind: input, shape index: {}]
  %s4 = inlined_call_operand.vmem [shape: bf16[16,256], index: 4, kind: input, shape index: {}]
  %s5 = inlined_call_operand.hbm [shape: f32[2,8,256], index: 5, kind: output, shape index: {}]
  %s6 = sld [smem:[#allocation0]]
  $region38: #{tpu_custom_call.1} parent=0
    _
  %s8 = ssub.s32 1, %s6
  %s9 = scalar_select 0, %s8, %s6
  $region1: #{tpu_custom_call.1} parent=0
    #allocation3 [shape = 'u8[16384]{0}', space=vmem, size = 0x4000, scoped, tag = 'output window, operand 0, single buffered']
    #allocation4 [shape = 's32[1]{0}', space=sflag, size = 0x4, scoped, tag = 'scoped memory for tpu_custom_call.1']
    %10 = vsyncpa [#allocation4], 0
    // Predicated region
    $region2: #{tpu_custom_call.1} parent=1 // pred_check
      _
    $region3: #{tpu_custom_call.1} parent=1 // pred_check_branch
      %12 = sbr.rel (0) target = $region5
    $region4: #{tpu_custom_call.1} parent=1 // pred_region
      _
    $region5: #{tpu_custom_call.1} parent=1 // pred_fallthru
      _
    // Predicated region
    $region6: #{tpu_custom_call.1} parent=1 // pred_check
      _
    $region7: #{tpu_custom_call.1} parent=1 // pred_check_branch
      %14 = sbr.rel (0) target = $region9
    $region8: #{tpu_custom_call.1} parent=1 // pred_region
      _
    $region9: #{tpu_custom_call.1} parent=1 // pred_fallthru
      _
    // Predicated region
    $region10: #{tpu_custom_call.1} parent=1 // pred_check
      _
    $region11: #{tpu_custom_call.1} parent=1 // pred_check_branch
      %16 = sbr.rel (0) target = $region13
    $region12: #{tpu_custom_call.1} parent=1 // pred_region
      _
    $region13: #{tpu_custom_call.1} parent=1 // pred_fallthru
      _
    // Predicated region
    $region14: #{tpu_custom_call.1} parent=1 // pred_check
      _
    $region15: #{tpu_custom_call.1} parent=1 // pred_check_branch
      %18 = sbr.rel (0) target = $region17
    $region16: #{tpu_custom_call.1} parent=1 // pred_region
      _
    $region17: #{tpu_custom_call.1} parent=1 // pred_fallthru
      _
    // Predicated region
    $region18: #{tpu_custom_call.1} parent=1 // pred_check
      _
    $region19: #{tpu_custom_call.1} parent=1 // pred_check_branch
      %20 = sbr.rel (0) target = $region21
    $region20: #{tpu_custom_call.1} parent=1 // pred_region
      _
    $region21: #{tpu_custom_call.1} parent=1 // pred_fallthru
      _
    %p22 = scmp.eq.s32.totalorder 0, 0
    // Predicated region
    $region22: #{tpu_custom_call.1} parent=1 // pred_check
      %p23 = pneg %p22
    $region23: #{tpu_custom_call.1} parent=1 // pred_check_branch
      %25 = sbr.rel (%p23) target = $region25
    $region24: #{tpu_custom_call.1} parent=1 // pred_region
      %vm26 = vcmask 130048
      %27 = vst.msk [vmem:[#allocation2] sm:$0xff] %vm26, 0.0
      %28 = vst.msk [vmem:[#allocation2 + $0x8] sm:$0xff] %vm26, 0.0
    $region25: #{tpu_custom_call.1} parent=1 // pred_fallthru
      _
    %v29 = vld [vmem:[%s1] sm:$0xf]
    %v30 = vld [vmem:[%s1 + $0x4] sm:$0xf]
    %v31 = vld [vmem:[%s1 + $0x8] sm:$0xf]
    %v32 = vld [vmem:[%s1 + $0xc] sm:$0xf]
    %v33 = vld [vmem:[%s1 + $0x10] sm:$0xf]
    %v34 = vld [vmem:[%s1 + $0x14] sm:$0xf]
    %v35 = vld [vmem:[%s1 + $0x18] sm:$0xf]
    %v36 = vld [vmem:[%s1 + $0x1c] sm:$0xf]
    %v37 = vld [vmem:[%s1 + $0x20] sm:$0xf]
    %v38 = vld [vmem:[%s1 + $0x24] sm:$0xf]
    %v39 = vld [vmem:[%s1 + $0x28] sm:$0xf]
    %v40 = vld [vmem:[%s1 + $0x2c] sm:$0xf]
    %v41 = vld [vmem:[%s1 + $0x30] sm:$0xf]
    %v42 = vld [vmem:[%s1 + $0x34] sm:$0xf]
    %v43 = vld [vmem:[%s1 + $0x38] sm:$0xf]
    %v44 = vld [vmem:[%s1 + $0x3c] sm:$0xf]
    %v45 = vld [vmem:[%s1 + $0x40] sm:$0xf]
    %v46 = vld [vmem:[%s1 + $0x44] sm:$0xf]
    %v47 = vld [vmem:[%s1 + $0x48] sm:$0xf]
    %v48 = vld [vmem:[%s1 + $0x4c] sm:$0xf]
    %v49 = vld [vmem:[%s1 + $0x50] sm:$0xf]
    %v50 = vld [vmem:[%s1 + $0x54] sm:$0xf]
    %v51 = vld [vmem:[%s1 + $0x58] sm:$0xf]
    %v52 = vld [vmem:[%s1 + $0x5c] sm:$0xf]
    %v53 = vld [vmem:[%s1 + $0x60] sm:$0xf]
    %v54 = vld [vmem:[%s1 + $0x64] sm:$0xf]
    %v55 = vld [vmem:[%s1 + $0x68] sm:$0xf]
    %v56 = vld [vmem:[%s1 + $0x6c] sm:$0xf]
    %v57 = vld [vmem:[%s1 + $0x70] sm:$0xf]
    %v58 = vld [vmem:[%s1 + $0x74] sm:$0xf]
    %v59 = vld [vmem:[%s1 + $0x78] sm:$0xf]
    %v60 = vld [vmem:[%s1 + $0x7c] sm:$0xf]
    %v61 = vld [vmem:[%s2] sm:$0xf]
    %v62 = vld [vmem:[%s0] sm:$0xff]
    %v64 = vcombine.high %v62, %v62
    %v66 = vpack.c.bf16 %v62, %v62
    %v67 = vpack.c.bf16 %v64, %v64
    %v100 = vunpack.c.l.b16 %v29
    %v101 = vunpack.c.l.b16 %v30
    %v102 = vunpack.c.l.b16 %v31
    %v103 = vunpack.c.l.b16 %v32
    %v104 = vunpack.c.l.b16 %v33
    %v105 = vunpack.c.l.b16 %v34
    %v106 = vunpack.c.l.b16 %v35
    %v107 = vunpack.c.l.b16 %v36
    %v108 = vunpack.c.l.b16 %v37
    %v109 = vunpack.c.l.b16 %v38
    %v110 = vunpack.c.l.b16 %v39
    %v111 = vunpack.c.l.b16 %v40
    %v112 = vunpack.c.l.b16 %v41
    %v113 = vunpack.c.l.b16 %v42
    %v114 = vunpack.c.l.b16 %v43
    %v115 = vunpack.c.l.b16 %v44
    %v116 = vunpack.c.l.b16 %v45
    %v117 = vunpack.c.l.b16 %v46
    %v118 = vunpack.c.l.b16 %v47
    %v119 = vunpack.c.l.b16 %v48
    %v120 = vunpack.c.l.b16 %v49
    %v121 = vunpack.c.l.b16 %v50
    %v122 = vunpack.c.l.b16 %v51
    %v123 = vunpack.c.l.b16 %v52
    %v124 = vunpack.c.l.b16 %v53
    %v125 = vunpack.c.l.b16 %v54
    %v126 = vunpack.c.l.b16 %v55
    %v127 = vunpack.c.l.b16 %v56
    %v128 = vunpack.c.l.b16 %v57
    %v129 = vunpack.c.l.b16 %v58
    %v130 = vunpack.c.l.b16 %v59
    %v131 = vunpack.c.l.b16 %v60
    %v132 = vpack.c.b16 %v101, %v100
    %v133 = vpack.c.b16 %v103, %v102
    %v134 = vpack.c.b16 %v105, %v104
    %v135 = vpack.c.b16 %v107, %v106
    %v136 = vpack.c.b16 %v109, %v108
    %v137 = vpack.c.b16 %v111, %v110
    %v138 = vpack.c.b16 %v113, %v112
    %v139 = vpack.c.b16 %v115, %v114
    %v140 = vpack.c.b16 %v117, %v116
    %v141 = vpack.c.b16 %v119, %v118
    %v142 = vpack.c.b16 %v121, %v120
    %v143 = vpack.c.b16 %v123, %v122
    %v144 = vpack.c.b16 %v125, %v124
    %v145 = vpack.c.b16 %v127, %v126
    %v146 = vpack.c.b16 %v129, %v128
    %v147 = vpack.c.b16 %v131, %v130
    %164 = vmatprep.subr.bf16.mxu0 0
    %165 = vmatpush1.bf16.msra.mxu0 %v132
    %166 = vmatprep.subr.bf16.mxu0 0
    %167 = vmatpush1.bf16.msra.mxu0 %v133
    %168 = vmatprep.subr.bf16.mxu0 0
    %169 = vmatpush1.bf16.msra.mxu0 %v134
    %170 = vmatprep.subr.bf16.mxu0 0
    %171 = vmatpush1.bf16.msra.mxu0 %v135
    %172 = vmatprep.subr.bf16.mxu0 0
    %173 = vmatpush1.bf16.msra.mxu0 %v136
    %174 = vmatprep.subr.bf16.mxu0 0
    %175 = vmatpush1.bf16.msra.mxu0 %v137
    %176 = vmatprep.subr.bf16.mxu0 0
    %177 = vmatpush1.bf16.msra.mxu0 %v138
    %178 = vmatprep.subr.bf16.mxu0 0
    %179 = vmatpush1.bf16.msra.mxu0 %v139
    %180 = vmatprep.subr.bf16.mxu0 0
    %181 = vmatpush1.bf16.msra.mxu0 %v140
    %182 = vmatprep.subr.bf16.mxu0 0
    %183 = vmatpush1.bf16.msra.mxu0 %v141
    %184 = vmatprep.subr.bf16.mxu0 0
    %185 = vmatpush1.bf16.msra.mxu0 %v142
    %186 = vmatprep.subr.bf16.mxu0 0
    %187 = vmatpush1.bf16.msra.mxu0 %v143
    %188 = vmatprep.subr.bf16.mxu0 0
    %189 = vmatpush1.bf16.msra.mxu0 %v144
    %190 = vmatprep.subr.bf16.mxu0 0
    %191 = vmatpush1.bf16.msra.mxu0 %v145
    %192 = vmatprep.subr.bf16.mxu0 0
    %193 = vmatpush1.bf16.msra.mxu0 %v146
    %194 = vmatprep.subr.bf16.mxu0 0
    %195 = vmatpush1.bf16.msra.mxu0 %v147
    %196 = vmatprep.mubr.bf16.mxu0 %v67
    %197 = vmatmul.mubr.bf16.gmra.mrb[0].mxu0 %v66
    %v198 = vpop.f32.mrb[0].mxu0
    %v199 = vadd.f32 0.0, %v198
    %v200 = vpop.f32.mrb[0].mxu0
    %v201 = vpop.f32.mrb[0].mxu0
    %v202 = vpop.f32.mrb[0].mxu0
    %203 = vdwg.mxu0
    %v204 = vpack.c.bf16 %v199, %v199
    %vm205 = vcmask 31744
    %v207 = vsel %vm205, %v61, 0
    %vm209 = vcmask 1041408
    %v211 = vsel %vm209, %v204, 0
    %213 = vmatprep.subr.bf16.mxu0 0
    %214 = vmatpush1.bf16.msra.mxu0 %v211
    %215 = vmatprep.subr.bf16.mxu0 0
    %216 = vmatpush1.bf16.msra.mxu0 0
    %217 = vmatprep.subr.bf16.mxu0 0
    %218 = vmatpush1.bf16.msra.mxu0 0
    %219 = vmatprep.subr.bf16.mxu0 0
    %220 = vmatpush1.bf16.msra.mxu0 0
    %221 = vmatprep.subr.bf16.mxu0 0
    %222 = vmatpush1.bf16.msra.mxu0 0
    %223 = vmatprep.subr.bf16.mxu0 0
    %224 = vmatpush1.bf16.msra.mxu0 0
    %225 = vmatprep.subr.bf16.mxu0 0
    %226 = vmatpush1.bf16.msra.mxu0 0
    %227 = vmatprep.subr.bf16.mxu0 0
    %228 = vmatpush1.bf16.msra.mxu0 0
    %229 = vmatprep.subr.bf16.mxu0 0
    %230 = vmatpush1.bf16.msra.mxu0 0
    %231 = vmatprep.subr.bf16.mxu0 0
    %232 = vmatpush1.bf16.msra.mxu0 0
    %233 = vmatprep.subr.bf16.mxu0 0
    %234 = vmatpush1.bf16.msra.mxu0 0
    %235 = vmatprep.subr.bf16.mxu0 0
    %236 = vmatpush1.bf16.msra.mxu0 0
    %237 = vmatprep.subr.bf16.mxu0 0
    %238 = vmatpush1.bf16.msra.mxu0 0
    %239 = vmatprep.subr.bf16.mxu0 0
    %240 = vmatpush1.bf16.msra.mxu0 0
    %241 = vmatprep.subr.bf16.mxu0 0
    %242 = vmatpush1.bf16.msra.mxu0 0
    %243 = vmatprep.subr.bf16.mxu0 0
    %244 = vmatpush1.bf16.msra.mxu0 0
    %245 = vmatprep.mubr.bf16.mxu0 0
    %246 = vmatmul.mubr.bf16.gmra.mrb[0].mxu0 %v207
    %v247 = vpop.f32.mrb[0].mxu0
    %v248 = vadd.f32 0.0, %v247
    %v249 = vpop.f32.mrb[0].mxu0
    %v250 = vpop.f32.mrb[0].mxu0
    %v251 = vpop.f32.mrb[0].mxu0
    %252 = vdwg.mxu0
    %v253 = vld [vmem:[#allocation2] sm:$0xff]
    %v254 = vadd.f32 %v253, %v248
    %vm255 = vcmask 130048
    %256 = vst.msk [vmem:[#allocation2] sm:$0xff] %vm255, %v254
    %s257 = scalar_lea.vmem %s0, 8
    %v258 = vld [vmem:[%s257] sm:$0xff]
    %v260 = vcombine.high %v258, %v258
    %v262 = vpack.c.bf16 %v258, %v258
    %v263 = vpack.c.bf16 %v260, %v260
    %264 = vmatprep.subr.bf16.mxu0 0
    %265 = vmatpush1.bf16.msra.mxu0 %v132
    %266 = vmatprep.subr.bf16.mxu0 0
    %267 = vmatpush1.bf16.msra.mxu0 %v133
    %268 = vmatprep.subr.bf16.mxu0 0
    %269 = vmatpush1.bf16.msra.mxu0 %v134
    %270 = vmatprep.subr.bf16.mxu0 0
    %271 = vmatpush1.bf16.msra.mxu0 %v135
    %272 = vmatprep.subr.bf16.mxu0 0
    %273 = vmatpush1.bf16.msra.mxu0 %v136
    %274 = vmatprep.subr.bf16.mxu0 0
    %275 = vmatpush1.bf16.msra.mxu0 %v137
    %276 = vmatprep.subr.bf16.mxu0 0
    %277 = vmatpush1.bf16.msra.mxu0 %v138
    %278 = vmatprep.subr.bf16.mxu0 0
    %279 = vmatpush1.bf16.msra.mxu0 %v139
    %280 = vmatprep.subr.bf16.mxu0 0
    %281 = vmatpush1.bf16.msra.mxu0 %v140
    %282 = vmatprep.subr.bf16.mxu0 0
    %283 = vmatpush1.bf16.msra.mxu0 %v141
    %284 = vmatprep.subr.bf16.mxu0 0
    %285 = vmatpush1.bf16.msra.mxu0 %v142
    %286 = vmatprep.subr.bf16.mxu0 0
    %287 = vmatpush1.bf16.msra.mxu0 %v143
    %288 = vmatprep.subr.bf16.mxu0 0
    %289 = vmatpush1.bf16.msra.mxu0 %v144
    %290 = vmatprep.subr.bf16.mxu0 0
    %291 = vmatpush1.bf16.msra.mxu0 %v145
    %292 = vmatprep.subr.bf16.mxu0 0
    %293 = vmatpush1.bf16.msra.mxu0 %v146
    %294 = vmatprep.subr.bf16.mxu0 0
    %295 = vmatpush1.bf16.msra.mxu0 %v147
    %296 = vmatprep.mubr.bf16.mxu0 %v263
    %297 = vmatmul.mubr.bf16.gmra.mrb[0].mxu0 %v262
    %v298 = vpop.f32.mrb[0].mxu0
    %v299 = vadd.f32 0.0, %v298
    %v300 = vpop.f32.mrb[0].mxu0
    %v301 = vpop.f32.mrb[0].mxu0
    %v302 = vpop.f32.mrb[0].mxu0
    %303 = vdwg.mxu0
    %v304 = vpack.c.bf16 %v299, %v299
    %v306 = vsel %vm209, %v304, 0
    %308 = vmatprep.subr.bf16.mxu0 0
    %309 = vmatpush1.bf16.msra.mxu0 %v306
    %310 = vmatprep.subr.bf16.mxu0 0
    %311 = vmatpush1.bf16.msra.mxu0 0
    %312 = vmatprep.subr.bf16.mxu0 0
    %313 = vmatpush1.bf16.msra.mxu0 0
    %314 = vmatprep.subr.bf16.mxu0 0
    %315 = vmatpush1.bf16.msra.mxu0 0
    %316 = vmatprep.subr.bf16.mxu0 0
    %317 = vmatpush1.bf16.msra.mxu0 0
    %318 = vmatprep.subr.bf16.mxu0 0
    %319 = vmatpush1.bf16.msra.mxu0 0
    %320 = vmatprep.subr.bf16.mxu0 0
    %321 = vmatpush1.bf16.msra.mxu0 0
    %322 = vmatprep.subr.bf16.mxu0 0
    %323 = vmatpush1.bf16.msra.mxu0 0
    %324 = vmatprep.subr.bf16.mxu0 0
    %325 = vmatpush1.bf16.msra.mxu0 0
    %326 = vmatprep.subr.bf16.mxu0 0
    %327 = vmatpush1.bf16.msra.mxu0 0
    %328 = vmatprep.subr.bf16.mxu0 0
    %329 = vmatpush1.bf16.msra.mxu0 0
    %330 = vmatprep.subr.bf16.mxu0 0
    %331 = vmatpush1.bf16.msra.mxu0 0
    %332 = vmatprep.subr.bf16.mxu0 0
    %333 = vmatpush1.bf16.msra.mxu0 0
    %334 = vmatprep.subr.bf16.mxu0 0
    %335 = vmatpush1.bf16.msra.mxu0 0
    %336 = vmatprep.subr.bf16.mxu0 0
    %337 = vmatpush1.bf16.msra.mxu0 0
    %338 = vmatprep.subr.bf16.mxu0 0
    %339 = vmatpush1.bf16.msra.mxu0 0
    %340 = vmatprep.mubr.bf16.mxu0 0
    %341 = vmatmul.mubr.bf16.gmra.mrb[0].mxu0 %v207
    %v342 = vpop.f32.mrb[0].mxu0
    %v343 = vadd.f32 0.0, %v342
    %v344 = vpop.f32.mrb[0].mxu0
    %v345 = vpop.f32.mrb[0].mxu0
    %v346 = vpop.f32.mrb[0].mxu0
    %347 = vdwg.mxu0
    %s348 = scalar_lea.vmem [#allocation2], 8
    %v349 = vld [vmem:[%s348] sm:$0xff]
    %v350 = vadd.f32 %v349, %v343
    %351 = vst.msk [vmem:[%s348] sm:$0xff] %vm255, %v350
    // Predicated region
    $region26: #{tpu_custom_call.1} parent=1 // pred_check
      %p352 = pneg %p22
    $region27: #{tpu_custom_call.1} parent=1 // pred_check_branch
      %354 = sbr.rel (%p352) target = $region29
    $region28: #{tpu_custom_call.1} parent=1 // pred_region
      %v355 = vld [vmem:[%s4] sm:$0xff]
      %v356 = vld [vmem:[%s4 + $0x8] sm:$0xff]
      %v357 = vld [vmem:[%s3] sm:$0xff]
      %v358 = vld [vmem:[#allocation2] sm:$0xff]
      %360 = vset.pattern.permute.xlu0 0
      %361 = vperm.xlu0 %360, %v357
      %v362 = vpop.permute.xlu0 %361
      %v364 = vadd.f32 %v358, %v362
      %v365 = vmax.f32 %v364, 0.0
      %v366 = vpack.c.bf16 %v365, %v365
      %v369 = vunpack.c.l.b16 %v355
      %v370 = vunpack.c.h.b16 %v355
      %v371 = vunpack.c.l.b16 %v356
      %v372 = vunpack.c.h.b16 %v356
      %v373 = vpack.c.b16 %v371, %v369
      %v374 = vpack.c.b16 %v372, %v370
      %v378 = vsel %vm255, %v366, 0
      %380 = vmatprep.subr.bf16.mxu0 %v374
      %381 = vmatpush1.bf16.msra.mxu0 %v373
      %382 = vmatprep.subr.bf16.mxu0 0
      %383 = vmatpush1.bf16.msra.mxu0 0
      %384 = vmatprep.subr.bf16.mxu0 0
      %385 = vmatpush1.bf16.msra.mxu0 0
      %386 = vmatprep.subr.bf16.mxu0 0
      %387 = vmatpush1.bf16.msra.mxu0 0
      %388 = vmatprep.subr.bf16.mxu0 0
      %389 = vmatpush1.bf16.msra.mxu0 0
      %390 = vmatprep.subr.bf16.mxu0 0
      %391 = vmatpush1.bf16.msra.mxu0 0
      %392 = vmatprep.subr.bf16.mxu0 0
      %393 = vmatpush1.bf16.msra.mxu0 0
      %394 = vmatprep.subr.bf16.mxu0 0
      %395 = vmatpush1.bf16.msra.mxu0 0
      %396 = vmatprep.subr.bf16.mxu0 0
      %397 = vmatpush1.bf16.msra.mxu0 0
      %398 = vmatprep.subr.bf16.mxu0 0
      %399 = vmatpush1.bf16.msra.mxu0 0
      %400 = vmatprep.subr.bf16.mxu0 0
      %401 = vmatpush1.bf16.msra.mxu0 0
      %402 = vmatprep.subr.bf16.mxu0 0
      %403 = vmatpush1.bf16.msra.mxu0 0
      %404 = vmatprep.subr.bf16.mxu0 0
      %405 = vmatpush1.bf16.msra.mxu0 0
      %406 = vmatprep.subr.bf16.mxu0 0
      %407 = vmatpush1.bf16.msra.mxu0 0
      %408 = vmatprep.subr.bf16.mxu0 0
      %409 = vmatpush1.bf16.msra.mxu0 0
      %410 = vmatprep.subr.bf16.mxu0 0
      %411 = vmatpush1.bf16.msra.mxu0 0
      %412 = vmatprep.mubr.bf16.mxu0 0
      %413 = vmatmul.mubr.bf16.gmra.mrb[0].mxu0 %v378
      %v414 = vpop.f32.mrb[0].mxu0
      %v415 = vadd.f32 0.0, %v414
      %v416 = vpop.f32.mrb[0].mxu0
      %v417 = vadd.f32 0.0, %v416
      %v418 = vpop.f32.mrb[0].mxu0
      %v419 = vpop.f32.mrb[0].mxu0
      %420 = vdwg.mxu0
      %421 = vst [vmem:[#allocation3] sm:$0xff] %v415
      %422 = vst [vmem:[#allocation3 + $0x8] sm:$0xff] %v417
      %v423 = vld [vmem:[%s348] sm:$0xff]
      %v424 = vadd.f32 %v423, %v362
      %v425 = vmax.f32 %v424, 0.0
      %v426 = vpack.c.bf16 %v425, %v425
      %v428 = vsel %vm255, %v426, 0
      %430 = vmatprep.subr.bf16.mxu0 %v374
      %431 = vmatpush1.bf16.msra.mxu0 %v373
      %432 = vmatprep.subr.bf16.mxu0 0
      %433 = vmatpush1.bf16.msra.mxu0 0
      %434 = vmatprep.subr.bf16.mxu0 0
      %435 = vmatpush1.bf16.msra.mxu0 0
      %436 = vmatprep.subr.bf16.mxu0 0
      %437 = vmatpush1.bf16.msra.mxu0 0
      %438 = vmatprep.subr.bf16.mxu0 0
      %439 = vmatpush1.bf16.msra.mxu0 0
      %440 = vmatprep.subr.bf16.mxu0 0
      %441 = vmatpush1.bf16.msra.mxu0 0
      %442 = vmatprep.subr.bf16.mxu0 0
      %443 = vmatpush1.bf16.msra.mxu0 0
      %444 = vmatprep.subr.bf16.mxu0 0
      %445 = vmatpush1.bf16.msra.mxu0 0
      %446 = vmatprep.subr.bf16.mxu0 0
      %447 = vmatpush1.bf16.msra.mxu0 0
      %448 = vmatprep.subr.bf16.mxu0 0
      %449 = vmatpush1.bf16.msra.mxu0 0
      %450 = vmatprep.subr.bf16.mxu0 0
      %451 = vmatpush1.bf16.msra.mxu0 0
      %452 = vmatprep.subr.bf16.mxu0 0
      %453 = vmatpush1.bf16.msra.mxu0 0
      %454 = vmatprep.subr.bf16.mxu0 0
      %455 = vmatpush1.bf16.msra.mxu0 0
      %456 = vmatprep.subr.bf16.mxu0 0
      %457 = vmatpush1.bf16.msra.mxu0 0
      %458 = vmatprep.subr.bf16.mxu0 0
      %459 = vmatpush1.bf16.msra.mxu0 0
      %460 = vmatprep.subr.bf16.mxu0 0
      %461 = vmatpush1.bf16.msra.mxu0 0
      %462 = vmatprep.mubr.bf16.mxu0 0
      %463 = vmatmul.mubr.bf16.gmra.mrb[0].mxu0 %v428
      %v464 = vpop.f32.mrb[0].mxu0
      %v465 = vadd.f32 0.0, %v464
      %v466 = vpop.f32.mrb[0].mxu0
      %v467 = vadd.f32 0.0, %v466
      %v468 = vpop.f32.mrb[0].mxu0
      %v469 = vpop.f32.mrb[0].mxu0
      %470 = vdwg.mxu0
      %s471 = scalar_lea.vmem [#allocation3], 16
      %472 = vst [vmem:[%s471] sm:$0xff] %v465
      %473 = vst [vmem:[%s471 + $0x8] sm:$0xff] %v467
    $region29: #{tpu_custom_call.1} parent=1 // pred_fallthru
      _
    // Predicated region
    $region30: #{tpu_custom_call.1} parent=1 // pred_check
      _
    $region31: #{tpu_custom_call.1} parent=1 // pred_check_branch
      %475 = sbr.rel (0) target = $region33
    $region32: #{tpu_custom_call.1} parent=1 // pred_region
      %s477 = ssub.s32 512, 512
      %478 = vsyncadd [#allocation4], %s477
      %s479 = sshll.u32 [#allocation3], 4
      %s480 = int_to_ptr.vmem [resolvable:$true] %s479
      %485 = dma.vmem_to_hbm [thread:$0]  %s480, 512, %s5, [#allocation4], 256, 256, 16
    $region33: #{tpu_custom_call.1} parent=1 // pred_fallthru
      _
    // Predicated region
    $region34: #{tpu_custom_call.1} parent=1 // pred_check
      _
    $region35: #{tpu_custom_call.1} parent=1 // pred_check_branch
      %487 = sbr.rel (0) target = $region37
    $region36: #{tpu_custom_call.1} parent=1 // pred_region
      %488 = dma.done [#allocation4], 512
    $region37: #{tpu_custom_call.1} parent=1 // pred_fallthru
      _
    %489 = vsyncpa [#allocation4], 1

</llo_original>
